<compile_context>
chip_gen: v6e
topology: v6e:2x2x1
jax: 0.10.0
libtpu: 0.0.40
codegen_flags: <defaults>
</compile_context>

<pallas_src>
import jax
import jax.numpy as jnp
from jax.experimental import pallas as pl
from jax.experimental.pallas import tpu as pltpu

HIDDEN = 500
BN_EPS = 1e-5
LANE = 128
TK_HARD_CAP = 8192            # never stream more than this many vocab cols/step


def _round_up(x: int, m: int) -> int:
    return ((x + m - 1) // m) * m


def _vmem_limit_bytes() -> int:
    """Per-generation VMEM ceiling: ~64 MiB on v5e/v6e (128 MiB physical VMEM),
    ~48 MiB on v7x (64 MiB physical). Conservative fallback if the query fails."""
    cap = 64 * 1024 * 1024
    try:
        info = pltpu.get_tpu_info()
        cap = int(getattr(info, "vmem_capacity_bytes", cap))
    except Exception:
        pass
    return int(min(cap * 3 // 4, 64 * 1024 * 1024))


def _pick_tk(v_pad, h_pad, out_pad, batch, x_item, w_item, vmem_limit) -> int:
    """Largest multiple of 128 that (a) divides v_pad, (b) keeps the
    double-buffered x / w1 tiles plus all resident blocks under the VMEM budget."""
    resident = (h_pad * out_pad * w_item * 2        # w2 (double-buffered by default)
                + h_pad * w_item * 2                # b1
                + out_pad * w_item * 2              # b2
                + batch * out_pad * 4 * 2           # resident f32 output tile
                + batch * h_pad * 4)                # f32 accumulator scratch
    margin = 2 * 1024 * 1024
    per_col = 2 * (batch * x_item + h_pad * w_item)   # x + w1 per vocab column, 2 bufs
    tk_cap = (vmem_limit - resident - margin) // max(per_col, 1)
    tk_cap = max(LANE, min(tk_cap, v_pad, TK_HARD_CAP))
    # largest multiple of 128 that divides v_pad and is <= tk_cap
    units = v_pad // LANE
    cap_units = max(1, tk_cap // LANE)
    best = 1
    for d in range(1, min(units, cap_units) + 1):
        if units % d == 0:
            best = d
    return best * LANE


def encoder_ln_kernel(x_ref, w1_ref, b1_ref, w2_ref, b2_ref, o_ref, acc_ref):
    k = pl.program_id(0)

    # --- init f32 accumulator on the first K step ---
    @pl.when(k == 0)
    def _init():
        acc_ref[...] = jnp.zeros_like(acc_ref)

    # --- Linear 1: K-tiled MXU accumulate (f32 accumulation) ---
    acc_ref[...] += jnp.dot(x_ref[...], w1_ref[...],
                            preferred_element_type=jnp.float32)

    # --- epilogue on the last K step: bias+ReLU, Linear 2, BN, Softplus ---
    @pl.when(k == pl.num_programs(0) - 1)
    def _epilogue():
        h = jnp.maximum(acc_ref[...] + b1_ref[...], 0.0)        # [B, 512]
        # Dropout(p=0.25): identity (eval-mode semantics).
        z = jnp.dot(h.astype(w2_ref.dtype), w2_ref[...],
                    preferred_element_type=jnp.float32)
        z = z + b2_ref[...]                                     # [B, OUT_PAD]

        # BatchNorm1d(affine=False): full-batch stats, biased variance.
        mean = jnp.mean(z, axis=0, keepdims=True)
        c = z - mean
        var = jnp.mean(c * c, axis=0, keepdims=True)
        zn = c * jax.lax.rsqrt(var + BN_EPS)

        # Softplus (beta=1, threshold=20), numerically stable; exp/log1p -> EUP.
        sp = jnp.where(zn > 20.0, zn,
                       jnp.log1p(jnp.exp(jnp.minimum(zn, 20.0))))
        o_ref[...] = sp.astype(o_ref.dtype)


def encoder_ln_forward(x, w1_p, b1_p, w2_p, b2_p, out_dim=None):
    """x: [B, V] (any float dtype).  Padded params from prepare_params():
    w1_p: [v_pad, 512], b1_p: [1, 512], w2_p: [512, out_pad], b2_p: [1, out_pad].
    Returns alpha: [B, out_dim] float32."""
    B, V = x.shape
    v_pad, h_pad = w1_p.shape
    out_pad = w2_p.shape[1]
    if out_dim is None:
        out_dim = out_pad
    assert v_pad % LANE == 0 and h_pad % LANE == 0 and out_pad % LANE == 0, \
        "parameters must be padded once via prepare_params()"
    assert V <= v_pad and v_pad - V < LANE, "x vocab inconsistent with padded weights"

    # Only pad x when the vocab is not 128-aligned (<= 127 zero columns).
    x_p = x if V == v_pad else jnp.pad(x, ((0, 0), (0, v_pad - V)))

    x_item = jnp.dtype(x_p.dtype).itemsize
    w_item = jnp.dtype(w1_p.dtype).itemsize
    vmem_limit = _vmem_limit_bytes()
    tk = _pick_tk(v_pad, h_pad, out_pad, B, x_item, w_item, vmem_limit)
    nk = v_pad // tk

    cost = pl.CostEstimate(
        flops=2 * B * v_pad * h_pad + 2 * B * h_pad * out_pad,
        transcendentals=2 * B * out_pad,
        bytes_accessed=(B * v_pad * x_item
                        + v_pad * h_pad * w_item
                        + h_pad * out_pad * w_item
                        + B * out_pad * 4),
    )

    out = pl.pallas_call(
        encoder_ln_kernel,
        out_shape=jax.ShapeDtypeStruct((B, out_pad), jnp.float32),
        grid_spec=pltpu.PrefetchScalarGridSpec(
            num_scalar_prefetch=0,
            grid=(nk,),
            in_specs=[
                pl.BlockSpec((B, tk), lambda k: (0, k)),           # x tile (streamed)
                pl.BlockSpec((tk, h_pad), lambda k: (k, 0)),       # w1 tile (streamed)
                pl.BlockSpec((1, h_pad), lambda k: (0, 0)),        # b1 resident
                pl.BlockSpec((h_pad, out_pad), lambda k: (0, 0)),  # w2 resident
                pl.BlockSpec((1, out_pad), lambda k: (0, 0)),      # b2 resident
            ],
            out_specs=pl.BlockSpec((B, out_pad), lambda k: (0, 0)),
            scratch_shapes=[pltpu.VMEM((B, h_pad), jnp.float32)],
        ),
        compiler_params=pltpu.CompilerParams(
            dimension_semantics=("arbitrary",),     # K is a reduction axis
            vmem_limit_bytes=vmem_limit,
        ),
        cost_estimate=cost,
    )(x_p, w1_p, b1_p, w2_p, b2_p)

    return out[:, :out_dim]


def make_params(key, vocab_size, num_topics):
    """Deterministic synthetic f32 parameters matching the PyTorch module shapes
    (stored as [in, out], i.e. transposed from nn.Linear's [out, in])."""
    k1, k2, k3, k4 = jax.random.split(key, 4)
    out_dim = 2 * num_topics
    w1 = jax.random.normal(k1, (vocab_size, HIDDEN), jnp.float32) * 0.05
    b1 = jax.random.normal(k2, (1, HIDDEN), jnp.float32) * 0.05
    w2 = jax.random.normal(k3, (HIDDEN, out_dim), jnp.float32) * 0.05
    b2 = jax.random.normal(k4, (1, out_dim), jnp.float32) * 0.05
    return w1, b1, w2, b2


def prepare_params(w1, b1, w2, b2, dtype=jnp.bfloat16):
    """ONE-TIME cast + zero-pad of parameters to kernel-friendly shapes.
    Do this at parameter-creation/load time, NOT per forward call.
    bf16 is the default streaming dtype (halves the HBM-bound w1 stream);
    the kernel always accumulates in f32."""
    V, H = w1.shape
    out_dim = w2.shape[1]
    v_pad = _round_up(V, LANE)
    h_pad = _round_up(H, LANE)          # 500 -> 512
    out_pad = _round_up(out_dim, LANE)
    w1_p = jnp.pad(w1, ((0, v_pad - V), (0, h_pad - H))).astype(dtype)
    b1_p = jnp.pad(b1, ((0, 0), (0, h_pad - H))).astype(dtype)
    w2_p = jnp.pad(w2, ((0, h_pad - H), (0, out_pad - out_dim))).astype(dtype)
    b2_p = jnp.pad(b2, ((0, 0), (0, out_pad - out_dim))).astype(dtype)
    return w1_p, b1_p, w2_p, b2_p


def reference_forward(x, w1, b1, w2, b2):
    """Pure-JAX (f32) reference of the same semantics (training-mode BN)."""
    h = jnp.maximum(x @ w1 + b1, 0.0)
    z = h @ w2 + b2
    mean = jnp.mean(z, axis=0, keepdims=True)
    var = jnp.mean((z - mean) ** 2, axis=0, keepdims=True)
    zn = (z - mean) / jnp.sqrt(var + BN_EPS)
    return jax.nn.softplus(zn)


if __name__ == "__main__":
    # Small, module-consistent shapes: batch=8, vocab_size=64, num_topics=4.
    B, VOCAB, NUM_TOPICS = 8, 64, 4

    key = jax.random.PRNGKey(0)
    kx, kp = jax.random.split(key)
    x = jax.random.uniform(kx, (B, VOCAB), jnp.float32)   # bag-of-words-like input
    w1, b1, w2, b2 = make_params(kp, VOCAB, NUM_TOPICS)

    ref = reference_forward(x, w1, b1, w2, b2)

    # f32 streaming path: tight numerical check against the pure-JAX reference.
    p_f32 = prepare_params(w1, b1, w2, b2, dtype=jnp.float32)   # padded ONCE
    alpha = jax.block_until_ready(
        encoder_ln_forward(x, *p_f32, out_dim=2 * NUM_TOPICS))
    assert alpha.shape == (B, 2 * NUM_TOPICS)
    assert jnp.allclose(alpha, ref, atol=1e-4, rtol=1e-4), "f32 mismatch vs reference"

    # bf16 streaming path (default; halves HBM weight traffic); loose check.
    p_bf16 = prepare_params(w1, b1, w2, b2)                      # padded ONCE, bf16
    alpha_bf = jax.block_until_ready(
        encoder_ln_forward(x.astype(jnp.bfloat16), *p_bf16, out_dim=2 * NUM_TOPICS))
    assert alpha_bf.shape == (B, 2 * NUM_TOPICS)
    assert jnp.allclose(alpha_bf, ref, atol=0.2, rtol=0.2), "bf16 mismatch vs reference"

    print("KERNEL_OK")
</pallas_src>

<mosaic_0001>
module attributes {stable_mosaic.version = 11 : i64} {
  func.func @encoder_ln_kernel(%arg0: i32, %arg1: memref<8x128xf32, #tpu.memory_space<vmem>>, %arg2: memref<128x512xf32, #tpu.memory_space<vmem>>, %arg3: memref<1x512xf32, #tpu.memory_space<vmem>>, %arg4: memref<512x128xf32, #tpu.memory_space<vmem>>, %arg5: memref<1x128xf32, #tpu.memory_space<vmem>>, %arg6: memref<8x128xf32, #tpu.memory_space<vmem>>, %arg7: memref<8x512xf32, #tpu.memory_space<vmem>>) attributes {dimension_semantics = [#tpu.dimension_semantics<arbitrary>], iteration_bounds = array<i64: 1>, scalar_prefetch = 0 : i64, scratch_operands = 1 : i64, tpu.core_type = #tpu.core_type<tc>, window_params = [{transform_indices = @transform_0, window_bounds = array<i64: 8, 128>}, {transform_indices = @transform_1, window_bounds = array<i64: 128, 512>}, {pipeline_mode = #tpu.pipeline_mode<synchronous>, transform_indices = @transform_2, window_bounds = array<i64: 1, 512>}, {pipeline_mode = #tpu.pipeline_mode<synchronous>, transform_indices = @transform_3, window_bounds = array<i64: 512, 128>}, {pipeline_mode = #tpu.pipeline_mode<synchronous>, transform_indices = @transform_4, window_bounds = array<i64: 1, 128>}, {pipeline_mode = #tpu.pipeline_mode<synchronous>, transform_indices = @transform_5, window_bounds = array<i64: 8, 128>}]} {
    %c0_i32 = arith.constant 0 : i32
    %0 = arith.cmpi eq, %arg0, %c0_i32 : i32
    %1 = arith.extui %0 : i1 to i32
    %c0_i32_0 = arith.constant 0 : i32
    %2 = arith.cmpi ne, %1, %c0_i32_0 : i32
    scf.if %2 {
      %cst_10 = arith.constant 0.000000e+00 : f32
      %12 = vector.broadcast %cst_10 : f32 to vector<8x512xf32>
      %c0_11 = arith.constant 0 : index
      %c0_12 = arith.constant 0 : index
      %13 = vector.load %arg7[%c0_11, %c0_12] : memref<8x512xf32, #tpu.memory_space<vmem>>, vector<8x512xf32>
      tpu.vector_store %arg7[%c0_11, %c0_12], %12 {strides = array<i32>} : memref<8x512xf32, #tpu.memory_space<vmem>>, vector<8x512xf32>,
    } else {
    }
    %c0 = arith.constant 0 : index
    %c0_1 = arith.constant 0 : index
    %3 = vector.load %arg7[%c0, %c0_1] : memref<8x512xf32, #tpu.memory_space<vmem>>, vector<8x512xf32>
    %c0_2 = arith.constant 0 : index
    %c0_3 = arith.constant 0 : index
    %4 = vector.load %arg1[%c0_2, %c0_3] : memref<8x128xf32, #tpu.memory_space<vmem>>, vector<8x128xf32>
    %c0_4 = arith.constant 0 : index
    %c0_5 = arith.constant 0 : index
    %5 = vector.load %arg2[%c0_4, %c0_5] : memref<128x512xf32, #tpu.memory_space<vmem>>, vector<128x512xf32>
    %cst = arith.constant dense<0.000000e+00> : vector<8x512xf32>
    %6 = tpu.matmul %4, %5, %cst {dimension_numbers = #tpu.dot_dimension_numbers<[1], [0], [0], [1], [0, 0, 1, 1], [], []>} : vector<8x128xf32>, vector<128x512xf32>, vector<8x512xf32> -> vector<8x512xf32>
    %7 = arith.addf %3, %6 : vector<8x512xf32>
    %c0_6 = arith.constant 0 : index
    %c0_7 = arith.constant 0 : index
    %8 = vector.load %arg7[%c0_6, %c0_7] : memref<8x512xf32, #tpu.memory_space<vmem>>, vector<8x512xf32>
    tpu.vector_store %arg7[%c0_6, %c0_7], %7 {strides = array<i32>} : memref<8x512xf32, #tpu.memory_space<vmem>>, vector<8x512xf32>,
    %c0_i32_8 = arith.constant 0 : i32
    %9 = arith.cmpi eq, %arg0, %c0_i32_8 : i32
    %10 = arith.extui %9 : i1 to i32
    %c0_i32_9 = arith.constant 0 : i32
    %11 = arith.cmpi ne, %10, %c0_i32_9 : i32
    scf.if %11 {
      %c0_10 = arith.constant 0 : index
      %c0_11 = arith.constant 0 : index
      %12 = vector.load %arg7[%c0_10, %c0_11] : memref<8x512xf32, #tpu.memory_space<vmem>>, vector<8x512xf32>
      %c0_12 = arith.constant 0 : index
      %c0_13 = arith.constant 0 : index
      %13 = vector.load %arg3[%c0_12, %c0_13] : memref<1x512xf32, #tpu.memory_space<vmem>>, vector<1x512xf32>
      %14 = vector.broadcast %13 : vector<1x512xf32> to vector<8x512xf32>
      %15 = arith.addf %12, %14 : vector<8x512xf32>
      %cst_14 = arith.constant 0.000000e+00 : f32
      %16 = vector.broadcast %cst_14 : f32 to vector<8x512xf32>
      %17 = arith.maximumf %15, %16 : vector<8x512xf32>
      %c0_15 = arith.constant 0 : index
      %c0_16 = arith.constant 0 : index
      %18 = vector.load %arg4[%c0_15, %c0_16] : memref<512x128xf32, #tpu.memory_space<vmem>>, vector<512x128xf32>
      %cst_17 = arith.constant dense<0.000000e+00> : vector<8x128xf32>
      %19 = tpu.matmul %17, %18, %cst_17 {dimension_numbers = #tpu.dot_dimension_numbers<[1], [0], [0], [1], [0, 0, 1, 1], [], []>} : vector<8x512xf32>, vector<512x128xf32>, vector<8x128xf32> -> vector<8x128xf32>
      %c0_18 = arith.constant 0 : index
      %c0_19 = arith.constant 0 : index
      %20 = vector.load %arg5[%c0_18, %c0_19] : memref<1x128xf32, #tpu.memory_space<vmem>>, vector<1x128xf32>
      %21 = vector.broadcast %20 : vector<1x128xf32> to vector<8x128xf32>
      %22 = arith.addf %19, %21 : vector<8x128xf32>
      %cst_20 = arith.constant dense<0.000000e+00> : vector<128xf32>
      %23 = vector.multi_reduction <add>, %22, %cst_20 [0] : vector<8x128xf32> to vector<128xf32>
      %24 = vector.shape_cast %23 : vector<128xf32> to vector<1x128xf32>
      %cst_21 = arith.constant 8.000000e+00 : f32
      %25 = vector.broadcast %cst_21 : f32 to vector<1x128xf32>
      %26 = arith.divf %24, %25 : vector<1x128xf32>
      %27 = vector.broadcast %26 : vector<1x128xf32> to vector<8x128xf32>
      %28 = arith.subf %22, %27 : vector<8x128xf32>
      %29 = arith.mulf %28, %28 : vector<8x128xf32>
      %cst_22 = arith.constant dense<0.000000e+00> : vector<128xf32>
      %30 = vector.multi_reduction <add>, %29, %cst_22 [0] : vector<8x128xf32> to vector<128xf32>
      %31 = vector.shape_cast %30 : vector<128xf32> to vector<1x128xf32>
      %cst_23 = arith.constant 8.000000e+00 : f32
      %32 = vector.broadcast %cst_23 : f32 to vector<1x128xf32>
      %33 = arith.divf %31, %32 : vector<1x128xf32>
      %cst_24 = arith.constant 9.99999974E-6 : f32
      %34 = vector.broadcast %cst_24 : f32 to vector<1x128xf32>
      %35 = arith.addf %33, %34 : vector<1x128xf32>
      %36 = math.rsqrt %35 : vector<1x128xf32>
      %37 = vector.broadcast %36 : vector<1x128xf32> to vector<8x128xf32>
      %38 = arith.mulf %28, %37 : vector<8x128xf32>
      %cst_25 = arith.constant 2.000000e+01 : f32
      %39 = vector.broadcast %cst_25 : f32 to vector<8x128xf32>
      %40 = arith.cmpf ogt, %38, %39 : vector<8x128xf32>
      %cst_26 = arith.constant 2.000000e+01 : f32
      %41 = vector.broadcast %cst_26 : f32 to vector<8x128xf32>
      %42 = arith.minimumf %38, %41 : vector<8x128xf32>
      %43 = math.exp %42 : vector<8x128xf32>
      %44 = math.log1p %43 : vector<8x128xf32>
      %45 = arith.select %40, %38, %44 : vector<8x128xi1>, vector<8x128xf32>
      %c0_27 = arith.constant 0 : index
      %c0_28 = arith.constant 0 : index
      %46 = vector.load %arg6[%c0_27, %c0_28] : memref<8x128xf32, #tpu.memory_space<vmem>>, vector<8x128xf32>
      tpu.vector_store %arg6[%c0_27, %c0_28], %45 {strides = array<i32>} : memref<8x128xf32, #tpu.memory_space<vmem>>, vector<8x128xf32>,
    } else {
    }
    return
  }
  func.func @transform_0(%arg0: i32) -> (i32, i32) {
    %c0_i32 = arith.constant 0 : i32
    %c0_i32_0 = arith.constant 0 : i32
    return %c0_i32, %arg0 : i32, i32
  }
  func.func @transform_1(%arg0: i32) -> (i32, i32) {
    %c0_i32 = arith.constant 0 : i32
    %c0_i32_0 = arith.constant 0 : i32
    return %arg0, %c0_i32 : i32, i32
  }
  func.func @transform_2(%arg0: i32) -> (i32, i32) {
    %c0_i32 = arith.constant 0 : i32
    %c0_i32_0 = arith.constant 0 : i32
    %c0_i32_1 = arith.constant 0 : i32
    return %c0_i32, %c0_i32_0 : i32, i32
  }
  func.func @transform_3(%arg0: i32) -> (i32, i32) {
    %c0_i32 = arith.constant 0 : i32
    %c0_i32_0 = arith.constant 0 : i32
    %c0_i32_1 = arith.constant 0 : i32
    return %c0_i32, %c0_i32_0 : i32, i32
  }
  func.func @transform_4(%arg0: i32) -> (i32, i32) {
    %c0_i32 = arith.constant 0 : i32
    %c0_i32_0 = arith.constant 0 : i32
    %c0_i32_1 = arith.constant 0 : i32
    return %c0_i32, %c0_i32_0 : i32, i32
  }
  func.func @transform_5(%arg0: i32) -> (i32, i32) {
    %c0_i32 = arith.constant 0 : i32
    %c0_i32_0 = arith.constant 0 : i32
    %c0_i32_1 = arith.constant 0 : i32
    return %c0_i32, %c0_i32_0 : i32, i32
  }
}

</mosaic_0001>

<llo_original>
// kernel: tpu_custom_call.1
$region0: #{tpu_custom_call.1}
  #allocation0 [shape = 'u32[]', space=smem, size = 0x4, offset = 0x4, fixed_abs, tag = 'smem constant byte address 0x4 - core index']
  #allocation1 [shape = 'u32[144,128]{1,0:T(1,128)}', space=vmem, size = 0x12000, scoped, tag = 'internal scratch']
  #allocation2 [shape = 'f32[8,512]{1,0:T(8,128)}', space=vmem, size = 0x4000, scoped, tag = 'scratch operand']
  %s0 = inlined_call_operand.hbm [shape: f32[8,128], index: 0, kind: input, shape index: {}]
  %s1 = inlined_call_operand.hbm [shape: f32[128,512], index: 1, kind: input, shape index: {}]
  %s2 = inlined_call_operand.hbm [shape: f32[1,512], index: 2, kind: input, shape index: {}]
  %s3 = inlined_call_operand.hbm [shape: f32[512,128], index: 3, kind: input, shape index: {}]
  %s4 = inlined_call_operand.vmem [shape: f32[1,128], index: 4, kind: input, shape index: {}]
  %s5 = inlined_call_operand.hbm [shape: f32[8,128], index: 5, kind: output, shape index: {}]
  %s6 = sld [smem:[#allocation0]]
  $region54: #{tpu_custom_call.1} parent=0
    _
  %s8 = ssub.s32 1, %s6
  %s9 = scalar_select 0, %s8, %s6
  $region1: #{tpu_custom_call.1} parent=0
    #allocation3 [shape = 'u8[4096]{0}', space=vmem, size = 0x1000, scoped, tag = 'input window, operand 0, single buffered']
    #allocation4 [shape = 's32[1]{0}', space=sflag, size = 0x4, scoped, tag = 'scoped memory for tpu_custom_call.1']
    #allocation5 [shape = 's32[1]{0}', space=sflag, size = 0x4, scoped, tag = 'scoped memory for tpu_custom_call.1']
    #allocation6 [shape = 'u8[262144]{0}', space=vmem, size = 0x40000, scoped, tag = 'input window, operand 1, single buffered']
    #allocation7 [shape = 's32[1]{0}', space=sflag, size = 0x4, scoped, tag = 'scoped memory for tpu_custom_call.1']
    #allocation8 [shape = 'u8[2048]{0}', space=vmem, size = 0x800, scoped, tag = 'input window, operand 2, single buffered']
    #allocation9 [shape = 'u8[262144]{0}', space=vmem, size = 0x40000, scoped, tag = 'input window, operand 3, single buffered']
    #allocation10 [shape = 's32[1]{0}', space=sflag, size = 0x4, scoped, tag = 'scoped memory for tpu_custom_call.1']
    #allocation11 [shape = 'u8[4096]{0}', space=vmem, size = 0x1000, scoped, tag = 'output window, operand 0, single buffered']
    %10 = vsyncpa [#allocation4], 0
    %11 = vsyncpa [#allocation7], 0
    %12 = vsyncpa [#allocation10], 0
    %13 = vsyncpa [#allocation5], 0
    // Predicated region
    $region2: #{tpu_custom_call.1} parent=1 // pred_check
      _
    $region3: #{tpu_custom_call.1} parent=1 // pred_check_branch
      %15 = sbr.rel (0) target = $region5
    $region4: #{tpu_custom_call.1} parent=1 // pred_region
      %s17 = ssub.s32 128, 128
      %18 = vsyncadd [#allocation4], %s17
      %s20 = sshll.u32 [#allocation3], 4
      %s21 = int_to_ptr.vmem [resolvable:$true] %s20
      %23 = dma.hbm_to_vmem [thread:$0]  %s0, 128, %s21, [#allocation4]
    $region5: #{tpu_custom_call.1} parent=1 // pred_fallthru
      _
    // Predicated region
    $region6: #{tpu_custom_call.1} parent=1 // pred_check
      _
    $region7: #{tpu_custom_call.1} parent=1 // pred_check_branch
      %25 = sbr.rel (0) target = $region9
    $region8: #{tpu_custom_call.1} parent=1 // pred_region
      %s27 = ssub.s32 8192, 8192
      %28 = vsyncadd [#allocation7], %s27
      %s29 = sshll.u32 [#allocation6], 4
      %s30 = int_to_ptr.vmem [resolvable:$true] %s29
      %35 = dma.hbm_to_vmem [thread:$0]  %s1, 8192, %s30, [#allocation7], 512, 512, 32
    $region9: #{tpu_custom_call.1} parent=1 // pred_fallthru
      _
    // Predicated region
    $region10: #{tpu_custom_call.1} parent=1 // pred_check
      _
    $region11: #{tpu_custom_call.1} parent=1 // pred_check_branch
      %37 = sbr.rel (0) target = $region13
    $region12: #{tpu_custom_call.1} parent=1 // pred_region
      %s39 = ssub.s32 64, 64
      %40 = vsyncadd [#allocation7], %s39
      %s42 = sshll.u32 [#allocation8], 4
      %s43 = int_to_ptr.vmem [resolvable:$true] %s42
      %45 = dma.hbm_to_vmem [thread:$0]  %s2, 64, %s43, [#allocation7]
    $region13: #{tpu_custom_call.1} parent=1 // pred_fallthru
      _
    // Predicated region
    $region14: #{tpu_custom_call.1} parent=1 // pred_check
      _
    $region15: #{tpu_custom_call.1} parent=1 // pred_check_branch
      %47 = sbr.rel (0) target = $region17
    $region16: #{tpu_custom_call.1} parent=1 // pred_region
      %s49 = ssub.s32 8192, 8192
      %50 = vsyncadd [#allocation10], %s49
      %s51 = sshll.u32 [#allocation9], 4
      %s52 = int_to_ptr.vmem [resolvable:$true] %s51
      %57 = dma.hbm_to_vmem [thread:$0]  %s3, 8192, %s52, [#allocation10], 128, 128, 8
    $region17: #{tpu_custom_call.1} parent=1 // pred_fallthru
      _
    // Predicated region
    $region18: #{tpu_custom_call.1} parent=1 // pred_check
      _
    $region19: #{tpu_custom_call.1} parent=1 // pred_check_branch
      %59 = sbr.rel (0) target = $region21
    $region20: #{tpu_custom_call.1} parent=1 // pred_region
      _
    $region21: #{tpu_custom_call.1} parent=1 // pred_fallthru
      _
    // Predicated region
    $region22: #{tpu_custom_call.1} parent=1 // pred_check
      _
    $region23: #{tpu_custom_call.1} parent=1 // pred_check_branch
      %61 = sbr.rel (0) target = $region25
    $region24: #{tpu_custom_call.1} parent=1 // pred_region
      %62 = dma.done [#allocation4], 128
    $region25: #{tpu_custom_call.1} parent=1 // pred_fallthru
      _
    // Predicated region
    $region26: #{tpu_custom_call.1} parent=1 // pred_check
      _
    $region27: #{tpu_custom_call.1} parent=1 // pred_check_branch
      %64 = sbr.rel (0) target = $region29
    $region28: #{tpu_custom_call.1} parent=1 // pred_region
      %65 = dma.done [#allocation7], 8192
    $region29: #{tpu_custom_call.1} parent=1 // pred_fallthru
      _
    // Predicated region
    $region30: #{tpu_custom_call.1} parent=1 // pred_check
      _
    $region31: #{tpu_custom_call.1} parent=1 // pred_check_branch
      %67 = sbr.rel (0) target = $region33
    $region32: #{tpu_custom_call.1} parent=1 // pred_region
      %68 = dma.done [#allocation7], 64
    $region33: #{tpu_custom_call.1} parent=1 // pred_fallthru
      _
    // Predicated region
    $region34: #{tpu_custom_call.1} parent=1 // pred_check
      _
    $region35: #{tpu_custom_call.1} parent=1 // pred_check_branch
      %70 = sbr.rel (0) target = $region37
    $region36: #{tpu_custom_call.1} parent=1 // pred_region
      %71 = dma.done [#allocation10], 8192
    $region37: #{tpu_custom_call.1} parent=1 // pred_fallthru
      _
    %p72 = scmp.eq.s32.totalorder 0, 0
    // Predicated region
    $region38: #{tpu_custom_call.1} parent=1 // pred_check
      %p73 = pneg %p72
    $region39: #{tpu_custom_call.1} parent=1 // pred_check_branch
      %75 = sbr.rel (%p73) target = $region41
    $region40: #{tpu_custom_call.1} parent=1 // pred_region
      %76 = vst [vmem:[#allocation2] sm:$0xff] 0.0
      %77 = vst [vmem:[#allocation2 + $0x8] sm:$0xff] 0.0
      %78 = vst [vmem:[#allocation2 + $0x10] sm:$0xff] 0.0
      %79 = vst [vmem:[#allocation2 + $0x18] sm:$0xff] 0.0
    $region41: #{tpu_custom_call.1} parent=1 // pred_fallthru
      _
    %v80 = vld [vmem:[#allocation2] sm:$0xff]
    %v81 = vld [vmem:[#allocation2 + $0x8] sm:$0xff]
    %v82 = vld [vmem:[#allocation2 + $0x10] sm:$0xff]
    %v83 = vld [vmem:[#allocation2 + $0x18] sm:$0xff]
    %v84 = vld [vmem:[#allocation3] sm:$0xff]
    %v85 = vld [vmem:[#allocation6] sm:$0xff]
    %v86 = vld [vmem:[#allocation6 + $0x8] sm:$0xff]
    %v87 = vld [vmem:[#allocation6 + $0x10] sm:$0xff]
    %v88 = vld [vmem:[#allocation6 + $0x18] sm:$0xff]
    %v89 = vld [vmem:[#allocation6 + $0x20] sm:$0xff]
    %v90 = vld [vmem:[#allocation6 + $0x28] sm:$0xff]
    %v91 = vld [vmem:[#allocation6 + $0x30] sm:$0xff]
    %v92 = vld [vmem:[#allocation6 + $0x38] sm:$0xff]
    %v93 = vld [vmem:[#allocation6 + $0x40] sm:$0xff]
    %v94 = vld [vmem:[#allocation6 + $0x48] sm:$0xff]
    %v95 = vld [vmem:[#allocation6 + $0x50] sm:$0xff]
    %v96 = vld [vmem:[#allocation6 + $0x58] sm:$0xff]
    %v97 = vld [vmem:[#allocation6 + $0x60] sm:$0xff]
    %v98 = vld [vmem:[#allocation6 + $0x68] sm:$0xff]
    %v99 = vld [vmem:[#allocation6 + $0x70] sm:$0xff]
    %v100 = vld [vmem:[#allocation6 + $0x78] sm:$0xff]
    %v101 = vld [vmem:[#allocation6 + $0x80] sm:$0xff]
    %v102 = vld [vmem:[#allocation6 + $0x88] sm:$0xff]
    %v103 = vld [vmem:[#allocation6 + $0x90] sm:$0xff]
    %v104 = vld [vmem:[#allocation6 + $0x98] sm:$0xff]
    %v105 = vld [vmem:[#allocation6 + $0xa0] sm:$0xff]
    %v106 = vld [vmem:[#allocation6 + $0xa8] sm:$0xff]
    %v107 = vld [vmem:[#allocation6 + $0xb0] sm:$0xff]
    %v108 = vld [vmem:[#allocation6 + $0xb8] sm:$0xff]
    %v109 = vld [vmem:[#allocation6 + $0xc0] sm:$0xff]
    %v110 = vld [vmem:[#allocation6 + $0xc8] sm:$0xff]
    %v111 = vld [vmem:[#allocation6 + $0xd0] sm:$0xff]
    %v112 = vld [vmem:[#allocation6 + $0xd8] sm:$0xff]
    %v113 = vld [vmem:[#allocation6 + $0xe0] sm:$0xff]
    %v114 = vld [vmem:[#allocation6 + $0xe8] sm:$0xff]
    %v115 = vld [vmem:[#allocation6 + $0xf0] sm:$0xff]
    %v116 = vld [vmem:[#allocation6 + $0xf8] sm:$0xff]
    %v117 = vld [vmem:[#allocation6 + $0x100] sm:$0xff]
    %v118 = vld [vmem:[#allocation6 + $0x108] sm:$0xff]
    %v119 = vld [vmem:[#allocation6 + $0x110] sm:$0xff]
    %v120 = vld [vmem:[#allocation6 + $0x118] sm:$0xff]
    %v121 = vld [vmem:[#allocation6 + $0x120] sm:$0xff]
    %v122 = vld [vmem:[#allocation6 + $0x128] sm:$0xff]
    %v123 = vld [vmem:[#allocation6 + $0x130] sm:$0xff]
    %v124 = vld [vmem:[#allocation6 + $0x138] sm:$0xff]
    %v125 = vld [vmem:[#allocation6 + $0x140] sm:$0xff]
    %v126 = vld [vmem:[#allocation6 + $0x148] sm:$0xff]
    %v127 = vld [vmem:[#allocation6 + $0x150] sm:$0xff]
    %v128 = vld [vmem:[#allocation6 + $0x158] sm:$0xff]
    %v129 = vld [vmem:[#allocation6 + $0x160] sm:$0xff]
    %v130 = vld [vmem:[#allocation6 + $0x168] sm:$0xff]
    %v131 = vld [vmem:[#allocation6 + $0x170] sm:$0xff]
    %v132 = vld [vmem:[#allocation6 + $0x178] sm:$0xff]
    %v133 = vld [vmem:[#allocation6 + $0x180] sm:$0xff]
    %v134 = vld [vmem:[#allocation6 + $0x188] sm:$0xff]
    %v135 = vld [vmem:[#allocation6 + $0x190] sm:$0xff]
    %v136 = vld [vmem:[#allocation6 + $0x198] sm:$0xff]
    %v137 = vld [vmem:[#allocation6 + $0x1a0] sm:$0xff]
    %v138 = vld [vmem:[#allocation6 + $0x1a8] sm:$0xff]
    %v139 = vld [vmem:[#allocation6 + $0x1b0] sm:$0xff]
    %v140 = vld [vmem:[#allocation6 + $0x1b8] sm:$0xff]
    %v141 = vld [vmem:[#allocation6 + $0x1c0] sm:$0xff]
    %v142 = vld [vmem:[#allocation6 + $0x1c8] sm:$0xff]
    %v143 = vld [vmem:[#allocation6 + $0x1d0] sm:$0xff]
    %v144 = vld [vmem:[#allocation6 + $0x1d8] sm:$0xff]
    %v145 = vld [vmem:[#allocation6 + $0x1e0] sm:$0xff]
    %v146 = vld [vmem:[#allocation6 + $0x1e8] sm:$0xff]
    %v147 = vld [vmem:[#allocation6 + $0x1f0] sm:$0xff]
    %v148 = vld [vmem:[#allocation6 + $0x1f8] sm:$0xff]
    %149 = vmatprep.subr.mxu0 %v146
    %150 = vmatpush1.msra.mxu0 %v145
    %151 = vmatprep.subr.mxu0 %v142
    %152 = vmatpush1.msra.mxu0 %v141
    %153 = vmatprep.subr.mxu0 %v138
    %154 = vmatpush1.msra.mxu0 %v137
    %155 = vmatprep.subr.mxu0 %v134
    %156 = vmatpush1.msra.mxu0 %v133
    %157 = vmatprep.subr.mxu0 %v130
    %158 = vmatpush1.msra.mxu0 %v129
    %159 = vmatprep.subr.mxu0 %v126
    %160 = vmatpush1.msra.mxu0 %v125
    %161 = vmatprep.subr.mxu0 %v122
    %162 = vmatpush1.msra.mxu0 %v121
    %163 = vmatprep.subr.mxu0 %v118
    %164 = vmatpush1.msra.mxu0 %v117
    %165 = vmatprep.subr.mxu0 %v114
    %166 = vmatpush1.msra.mxu0 %v113
    %167 = vmatprep.subr.mxu0 %v110
    %168 = vmatpush1.msra.mxu0 %v109
    %169 = vmatprep.subr.mxu0 %v106
    %170 = vmatpush1.msra.mxu0 %v105
    %171 = vmatprep.subr.mxu0 %v102
    %172 = vmatpush1.msra.mxu0 %v101
    %173 = vmatprep.subr.mxu0 %v98
    %174 = vmatpush1.msra.mxu0 %v97
    %175 = vmatprep.subr.mxu0 %v94
    %176 = vmatpush1.msra.mxu0 %v93
    %177 = vmatprep.subr.mxu0 %v90
    %178 = vmatpush1.msra.mxu0 %v89
    %179 = vmatprep.subr.mxu0 %v86
    %180 = vmatpush1.msra.mxu0 %v85
    %181 = vmatprep.subr.mxu0 0.0
    %182 = vmatpush2.msra.mxu0 0.0
    %183 = vmatprep.subr.mxu0 0.0
    %184 = vmatpush2.msra.mxu0 0.0
    %185 = vmatprep.subr.mxu0 0.0
    %186 = vmatpush2.msra.mxu0 0.0
    %187 = vmatprep.subr.mxu0 0.0
    %188 = vmatpush2.msra.mxu0 0.0
    %189 = vmatprep.subr.mxu0 0.0
    %190 = vmatpush2.msra.mxu0 0.0
    %191 = vmatprep.subr.mxu0 0.0
    %192 = vmatpush2.msra.mxu0 0.0
    %193 = vmatprep.subr.mxu0 0.0
    %194 = vmatpush2.msra.mxu0 0.0
    %195 = vmatprep.subr.mxu0 0.0
    %196 = vmatpush2.msra.mxu0 0.0
    %197 = vmatprep.subr.mxu0 0.0
    %198 = vmatpush2.msra.mxu0 0.0
    %199 = vmatprep.subr.mxu0 0.0
    %200 = vmatpush2.msra.mxu0 0.0
    %201 = vmatprep.subr.mxu0 0.0
    %202 = vmatpush2.msra.mxu0 0.0
    %203 = vmatprep.subr.mxu0 0.0
    %204 = vmatpush2.msra.mxu0 0.0
    %205 = vmatprep.subr.mxu0 0.0
    %206 = vmatpush2.msra.mxu0 0.0
    %207 = vmatprep.subr.mxu0 0.0
    %208 = vmatpush2.msra.mxu0 0.0
    %209 = vmatprep.subr.mxu0 0.0
    %210 = vmatpush2.msra.mxu0 0.0
    %211 = vmatprep.subr.mxu0 0.0
    %212 = vmatpush2.msra.mxu0 0.0
    %213 = vmatprep.mubr.f32.mxu0 0.0
    %214 = vmatmul.mubr.f32.gmra.mxu0 %v84
    %v215 = vpop.f32.mrf.mxu0
    %v216 = vadd.f32 0.0, %v215
    %v217 = vpop.f32.mrf.mxu0
    %v218 = vadd.f32 0.0, %v217
    %219 = vdwg.mxu0
    %220 = vmatprep.subr.mxu0 %v148
    %221 = vmatpush1.msra.mxu0 %v147
    %222 = vmatprep.subr.mxu0 %v144
    %223 = vmatpush1.msra.mxu0 %v143
    %224 = vmatprep.subr.mxu0 %v140
    %225 = vmatpush1.msra.mxu0 %v139
    %226 = vmatprep.subr.mxu0 %v136
    %227 = vmatpush1.msra.mxu0 %v135
    %228 = vmatprep.subr.mxu0 %v132
    %229 = vmatpush1.msra.mxu0 %v131
    %230 = vmatprep.subr.mxu0 %v128
    %231 = vmatpush1.msra.mxu0 %v127
    %232 = vmatprep.subr.mxu0 %v124
    %233 = vmatpush1.msra.mxu0 %v123
    %234 = vmatprep.subr.mxu0 %v120
    %235 = vmatpush1.msra.mxu0 %v119
    %236 = vmatprep.subr.mxu0 %v116
    %237 = vmatpush1.msra.mxu0 %v115
    %238 = vmatprep.subr.mxu0 %v112
    %239 = vmatpush1.msra.mxu0 %v111
    %240 = vmatprep.subr.mxu0 %v108
    %241 = vmatpush1.msra.mxu0 %v107
    %242 = vmatprep.subr.mxu0 %v104
    %243 = vmatpush1.msra.mxu0 %v103
    %244 = vmatprep.subr.mxu0 %v100
    %245 = vmatpush1.msra.mxu0 %v99
    %246 = vmatprep.subr.mxu0 %v96
    %247 = vmatpush1.msra.mxu0 %v95
    %248 = vmatprep.subr.mxu0 %v92
    %249 = vmatpush1.msra.mxu0 %v91
    %250 = vmatprep.subr.mxu0 %v88
    %251 = vmatpush1.msra.mxu0 %v87
    %252 = vmatprep.subr.mxu0 0.0
    %253 = vmatpush2.msra.mxu0 0.0
    %254 = vmatprep.subr.mxu0 0.0
    %255 = vmatpush2.msra.mxu0 0.0
    %256 = vmatprep.subr.mxu0 0.0
    %257 = vmatpush2.msra.mxu0 0.0
    %258 = vmatprep.subr.mxu0 0.0
    %259 = vmatpush2.msra.mxu0 0.0
    %260 = vmatprep.subr.mxu0 0.0
    %261 = vmatpush2.msra.mxu0 0.0
    %262 = vmatprep.subr.mxu0 0.0
    %263 = vmatpush2.msra.mxu0 0.0
    %264 = vmatprep.subr.mxu0 0.0
    %265 = vmatpush2.msra.mxu0 0.0
    %266 = vmatprep.subr.mxu0 0.0
    %267 = vmatpush2.msra.mxu0 0.0
    %268 = vmatprep.subr.mxu0 0.0
    %269 = vmatpush2.msra.mxu0 0.0
    %270 = vmatprep.subr.mxu0 0.0
    %271 = vmatpush2.msra.mxu0 0.0
    %272 = vmatprep.subr.mxu0 0.0
    %273 = vmatpush2.msra.mxu0 0.0
    %274 = vmatprep.subr.mxu0 0.0
    %275 = vmatpush2.msra.mxu0 0.0
    %276 = vmatprep.subr.mxu0 0.0
    %277 = vmatpush2.msra.mxu0 0.0
    %278 = vmatprep.subr.mxu0 0.0
    %279 = vmatpush2.msra.mxu0 0.0
    %280 = vmatprep.subr.mxu0 0.0
    %281 = vmatpush2.msra.mxu0 0.0
    %282 = vmatprep.subr.mxu0 0.0
    %283 = vmatpush2.msra.mxu0 0.0
    %284 = vmatprep.mubr.f32.mxu0 0.0
    %285 = vmatmul.mubr.f32.gmra.mxu0 %v84
    %v286 = vpop.f32.mrf.mxu0
    %v287 = vadd.f32 0.0, %v286
    %v288 = vpop.f32.mrf.mxu0
    %v289 = vadd.f32 0.0, %v288
    %290 = vdwg.mxu0
    %v291 = vadd.f32 %v80, %v216
    %v292 = vadd.f32 %v81, %v218
    %v293 = vadd.f32 %v82, %v287
    %v294 = vadd.f32 %v83, %v289
    %295 = vst [vmem:[#allocation2] sm:$0xff] %v291
    %296 = vst [vmem:[#allocation2 + $0x8] sm:$0xff] %v292
    %297 = vst [vmem:[#allocation2 + $0x10] sm:$0xff] %v293
    %298 = vst [vmem:[#allocation2 + $0x18] sm:$0xff] %v294
    // Predicated region
    $region42: #{tpu_custom_call.1} parent=1 // pred_check
      %p299 = pneg %p72
    $region43: #{tpu_custom_call.1} parent=1 // pred_check_branch
      %301 = sbr.rel (%p299) target = $region45
    $region44: #{tpu_custom_call.1} parent=1 // pred_region
      %v302 = vld [vmem:[#allocation2] sm:$0xff]
      %v303 = vld [vmem:[#allocation2 + $0x8] sm:$0xff]
      %v304 = vld [vmem:[#allocation2 + $0x10] sm:$0xff]
      %v305 = vld [vmem:[#allocation2 + $0x18] sm:$0xff]
      %v306 = vld [vmem:[#allocation8] sm:$0xf]
      %v308 = vlaneseq
      %v309 = vshrl.u32 %v308, 7
      %v310 = vsub.s32 0, %v309
      %v311 = vrot.slane %v306, %v310
      %v312 = vlaneseq
      %v313 = vshrl.u32 %v312, 7
      %v314 = vsub.s32 1, %v313
      %v315 = vrot.slane %v306, %v314
      %v316 = vlaneseq
      %v317 = vshrl.u32 %v316, 7
      %v318 = vsub.s32 2, %v317
      %v319 = vrot.slane %v306, %v318
      %v320 = vlaneseq
      %v321 = vshrl.u32 %v320, 7
      %v322 = vsub.s32 3, %v321
      %v323 = vrot.slane %v306, %v322
      %v328 = vadd.f32 %v302, %v311
      %v329 = vadd.f32 %v303, %v315
      %v330 = vadd.f32 %v304, %v319
      %v331 = vadd.f32 %v305, %v323
      %v332 = vmax.f32 %v328, 0.0
      %v333 = vmax.f32 %v329, 0.0
      %v334 = vmax.f32 %v330, 0.0
      %v335 = vmax.f32 %v331, 0.0
      %v336 = vld [vmem:[#allocation9] sm:$0xff]
      %v337 = vld [vmem:[#allocation9 + $0x8] sm:$0xff]
      %v338 = vld [vmem:[#allocation9 + $0x10] sm:$0xff]
      %v339 = vld [vmem:[#allocation9 + $0x18] sm:$0xff]
      %v340 = vld [vmem:[#allocation9 + $0x20] sm:$0xff]
      %v341 = vld [vmem:[#allocation9 + $0x28] sm:$0xff]
      %v342 = vld [vmem:[#allocation9 + $0x30] sm:$0xff]
      %v343 = vld [vmem:[#allocation9 + $0x38] sm:$0xff]
      %v344 = vld [vmem:[#allocation9 + $0x40] sm:$0xff]
      %v345 = vld [vmem:[#allocation9 + $0x48] sm:$0xff]
      %v346 = vld [vmem:[#allocation9 + $0x50] sm:$0xff]
      %v347 = vld [vmem:[#allocation9 + $0x58] sm:$0xff]
      %v348 = vld [vmem:[#allocation9 + $0x60] sm:$0xff]
      %v349 = vld [vmem:[#allocation9 + $0x68] sm:$0xff]
      %v350 = vld [vmem:[#allocation9 + $0x70] sm:$0xff]
      %v351 = vld [vmem:[#allocation9 + $0x78] sm:$0xff]
      %v352 = vld [vmem:[#allocation9 + $0x80] sm:$0xff]
      %v353 = vld [vmem:[#allocation9 + $0x88] sm:$0xff]
      %v354 = vld [vmem:[#allocation9 + $0x90] sm:$0xff]
      %v355 = vld [vmem:[#allocation9 + $0x98] sm:$0xff]
      %v356 = vld [vmem:[#allocation9 + $0xa0] sm:$0xff]
      %v357 = vld [vmem:[#allocation9 + $0xa8] sm:$0xff]
      %v358 = vld [vmem:[#allocation9 + $0xb0] sm:$0xff]
      %v359 = vld [vmem:[#allocation9 + $0xb8] sm:$0xff]
      %v360 = vld [vmem:[#allocation9 + $0xc0] sm:$0xff]
      %v361 = vld [vmem:[#allocation9 + $0xc8] sm:$0xff]
      %v362 = vld [vmem:[#allocation9 + $0xd0] sm:$0xff]
      %v363 = vld [vmem:[#allocation9 + $0xd8] sm:$0xff]
      %v364 = vld [vmem:[#allocation9 + $0xe0] sm:$0xff]
      %v365 = vld [vmem:[#allocation9 + $0xe8] sm:$0xff]
      %v366 = vld [vmem:[#allocation9 + $0xf0] sm:$0xff]
      %v367 = vld [vmem:[#allocation9 + $0xf8] sm:$0xff]
      %v368 = vld [vmem:[#allocation9 + $0x100] sm:$0xff]
      %v369 = vld [vmem:[#allocation9 + $0x108] sm:$0xff]
      %v370 = vld [vmem:[#allocation9 + $0x110] sm:$0xff]
      %v371 = vld [vmem:[#allocation9 + $0x118] sm:$0xff]
      %v372 = vld [vmem:[#allocation9 + $0x120] sm:$0xff]
      %v373 = vld [vmem:[#allocation9 + $0x128] sm:$0xff]
      %v374 = vld [vmem:[#allocation9 + $0x130] sm:$0xff]
      %v375 = vld [vmem:[#allocation9 + $0x138] sm:$0xff]
      %v376 = vld [vmem:[#allocation9 + $0x140] sm:$0xff]
      %v377 = vld [vmem:[#allocation9 + $0x148] sm:$0xff]
      %v378 = vld [vmem:[#allocation9 + $0x150] sm:$0xff]
      %v379 = vld [vmem:[#allocation9 + $0x158] sm:$0xff]
      %v380 = vld [vmem:[#allocation9 + $0x160] sm:$0xff]
      %v381 = vld [vmem:[#allocation9 + $0x168] sm:$0xff]
      %v382 = vld [vmem:[#allocation9 + $0x170] sm:$0xff]
      %v383 = vld [vmem:[#allocation9 + $0x178] sm:$0xff]
      %v384 = vld [vmem:[#allocation9 + $0x180] sm:$0xff]
      %v385 = vld [vmem:[#allocation9 + $0x188] sm:$0xff]
      %v386 = vld [vmem:[#allocation9 + $0x190] sm:$0xff]
      %v387 = vld [vmem:[#allocation9 + $0x198] sm:$0xff]
      %v388 = vld [vmem:[#allocation9 + $0x1a0] sm:$0xff]
      %v389 = vld [vmem:[#allocation9 + $0x1a8] sm:$0xff]
      %v390 = vld [vmem:[#allocation9 + $0x1b0] sm:$0xff]
      %v391 = vld [vmem:[#allocation9 + $0x1b8] sm:$0xff]
      %v392 = vld [vmem:[#allocation9 + $0x1c0] sm:$0xff]
      %v393 = vld [vmem:[#allocation9 + $0x1c8] sm:$0xff]
      %v394 = vld [vmem:[#allocation9 + $0x1d0] sm:$0xff]
      %v395 = vld [vmem:[#allocation9 + $0x1d8] sm:$0xff]
      %v396 = vld [vmem:[#allocation9 + $0x1e0] sm:$0xff]
      %v397 = vld [vmem:[#allocation9 + $0x1e8] sm:$0xff]
      %v398 = vld [vmem:[#allocation9 + $0x1f0] sm:$0xff]
      %v399 = vld [vmem:[#allocation9 + $0x1f8] sm:$0xff]
      %v400 = vld [vmem:[%s4] sm:$0x1]
      %v402 = vlaneseq
      %v403 = vshrl.u32 %v402, 7
      %v404 = vsub.s32 0, %v403
      %v405 = vrot.slane %v400, %v404
      %407 = vmatprep.subr.mxu0 0.0
      %408 = vmatpush1.msra.mxu0 %v351
      %409 = vmatprep.subr.mxu0 0.0
      %410 = vmatpush1.msra.mxu0 %v350
      %411 = vmatprep.subr.mxu0 0.0
      %412 = vmatpush1.msra.mxu0 %v349
      %413 = vmatprep.subr.mxu0 0.0
      %414 = vmatpush1.msra.mxu0 %v348
      %415 = vmatprep.subr.mxu0 0.0
      %416 = vmatpush1.msra.mxu0 %v347
      %417 = vmatprep.subr.mxu0 0.0
      %418 = vmatpush1.msra.mxu0 %v346
      %419 = vmatprep.subr.mxu0 0.0
      %420 = vmatpush1.msra.mxu0 %v345
      %421 = vmatprep.subr.mxu0 0.0
      %422 = vmatpush1.msra.mxu0 %v344
      %423 = vmatprep.subr.mxu0 0.0
      %424 = vmatpush1.msra.mxu0 %v343
      %425 = vmatprep.subr.mxu0 0.0
      %426 = vmatpush1.msra.mxu0 %v342
      %427 = vmatprep.subr.mxu0 0.0
      %428 = vmatpush1.msra.mxu0 %v341
      %429 = vmatprep.subr.mxu0 0.0
      %430 = vmatpush1.msra.mxu0 %v340
      %431 = vmatprep.subr.mxu0 0.0
      %432 = vmatpush1.msra.mxu0 %v339
      %433 = vmatprep.subr.mxu0 0.0
      %434 = vmatpush1.msra.mxu0 %v338
      %435 = vmatprep.subr.mxu0 0.0
      %436 = vmatpush1.msra.mxu0 %v337
      %437 = vmatprep.subr.mxu0 0.0
      %438 = vmatpush1.msra.mxu0 %v336
      %439 = vmatprep.subr.mxu0 0.0
      %440 = vmatpush2.msra.mxu0 %v367
      %441 = vmatprep.subr.mxu0 0.0
      %442 = vmatpush2.msra.mxu0 %v366
      %443 = vmatprep.subr.mxu0 0.0
      %444 = vmatpush2.msra.mxu0 %v365
      %445 = vmatprep.subr.mxu0 0.0
      %446 = vmatpush2.msra.mxu0 %v364
      %447 = vmatprep.subr.mxu0 0.0
      %448 = vmatpush2.msra.mxu0 %v363
      %449 = vmatprep.subr.mxu0 0.0
      %450 = vmatpush2.msra.mxu0 %v362
      %451 = vmatprep.subr.mxu0 0.0
      %452 = vmatpush2.msra.mxu0 %v361
      %453 = vmatprep.subr.mxu0 0.0
      %454 = vmatpush2.msra.mxu0 %v360
      %455 = vmatprep.subr.mxu0 0.0
      %456 = vmatpush2.msra.mxu0 %v359
      %457 = vmatprep.subr.mxu0 0.0
      %458 = vmatpush2.msra.mxu0 %v358
      %459 = vmatprep.subr.mxu0 0.0
      %460 = vmatpush2.msra.mxu0 %v357
      %461 = vmatprep.subr.mxu0 0.0
      %462 = vmatpush2.msra.mxu0 %v356
      %463 = vmatprep.subr.mxu0 0.0
      %464 = vmatpush2.msra.mxu0 %v355
      %465 = vmatprep.subr.mxu0 0.0
      %466 = vmatpush2.msra.mxu0 %v354
      %467 = vmatprep.subr.mxu0 0.0
      %468 = vmatpush2.msra.mxu0 %v353
      %469 = vmatprep.subr.mxu0 0.0
      %470 = vmatpush2.msra.mxu0 %v352
      %471 = vmatprep.mubr.f32.mxu0 %v333
      %472 = vmatmul.mubr.f32.gmra.mxu0 %v332
      %v473 = vpop.f32.mrf.mxu0
      %v474 = vadd.f32 %v405, %v473
      %v475 = vpop.f32.mrf.mxu0
      %476 = vdwg.mxu0
      %477 = vmatprep.subr.mxu0 0.0
      %478 = vmatpush1.msra.mxu0 %v383
      %479 = vmatprep.subr.mxu0 0.0
      %480 = vmatpush1.msra.mxu0 %v382
      %481 = vmatprep.subr.mxu0 0.0
      %482 = vmatpush1.msra.mxu0 %v381
      %483 = vmatprep.subr.mxu0 0.0
      %484 = vmatpush1.msra.mxu0 %v380
      %485 = vmatprep.subr.mxu0 0.0
      %486 = vmatpush1.msra.mxu0 %v379
      %487 = vmatprep.subr.mxu0 0.0
      %488 = vmatpush1.msra.mxu0 %v378
      %489 = vmatprep.subr.mxu0 0.0
      %490 = vmatpush1.msra.mxu0 %v377
      %491 = vmatprep.subr.mxu0 0.0
      %492 = vmatpush1.msra.mxu0 %v376
      %493 = vmatprep.subr.mxu0 0.0
      %494 = vmatpush1.msra.mxu0 %v375
      %495 = vmatprep.subr.mxu0 0.0
      %496 = vmatpush1.msra.mxu0 %v374
      %497 = vmatprep.subr.mxu0 0.0
      %498 = vmatpush1.msra.mxu0 %v373
      %499 = vmatprep.subr.mxu0 0.0
      %500 = vmatpush1.msra.mxu0 %v372
      %501 = vmatprep.subr.mxu0 0.0
      %502 = vmatpush1.msra.mxu0 %v371
      %503 = vmatprep.subr.mxu0 0.0
      %504 = vmatpush1.msra.mxu0 %v370
      %505 = vmatprep.subr.mxu0 0.0
      %506 = vmatpush1.msra.mxu0 %v369
      %507 = vmatprep.subr.mxu0 0.0
      %508 = vmatpush1.msra.mxu0 %v368
      %509 = vmatprep.subr.mxu0 0.0
      %510 = vmatpush2.msra.mxu0 %v399
      %511 = vmatprep.subr.mxu0 0.0
      %512 = vmatpush2.msra.mxu0 %v398
      %513 = vmatprep.subr.mxu0 0.0
      %514 = vmatpush2.msra.mxu0 %v397
      %515 = vmatprep.subr.mxu0 0.0
      %516 = vmatpush2.msra.mxu0 %v396
      %517 = vmatprep.subr.mxu0 0.0
      %518 = vmatpush2.msra.mxu0 %v395
      %519 = vmatprep.subr.mxu0 0.0
      %520 = vmatpush2.msra.mxu0 %v394
      %521 = vmatprep.subr.mxu0 0.0
      %522 = vmatpush2.msra.mxu0 %v393
      %523 = vmatprep.subr.mxu0 0.0
      %524 = vmatpush2.msra.mxu0 %v392
      %525 = vmatprep.subr.mxu0 0.0
      %526 = vmatpush2.msra.mxu0 %v391
      %527 = vmatprep.subr.mxu0 0.0
      %528 = vmatpush2.msra.mxu0 %v390
      %529 = vmatprep.subr.mxu0 0.0
      %530 = vmatpush2.msra.mxu0 %v389
      %531 = vmatprep.subr.mxu0 0.0
      %532 = vmatpush2.msra.mxu0 %v388
      %533 = vmatprep.subr.mxu0 0.0
      %534 = vmatpush2.msra.mxu0 %v387
      %535 = vmatprep.subr.mxu0 0.0
      %536 = vmatpush2.msra.mxu0 %v386
      %537 = vmatprep.subr.mxu0 0.0
      %538 = vmatpush2.msra.mxu0 %v385
      %539 = vmatprep.subr.mxu0 0.0
      %540 = vmatpush2.msra.mxu0 %v384
      %541 = vmatprep.mubr.f32.mxu0 %v335
      %542 = vmatmul.mubr.f32.gmra.mxu0 %v334
      %v543 = vpop.f32.mrf.mxu0
      %v544 = vadd.f32 %v474, %v543
      %v545 = vpop.f32.mrf.mxu0
      %546 = vdwg.mxu0
      %v547 = vrot.slane %v544, 4
      %v548 = vadd.f32 %v544, %v547
      %v549 = vrot.slane %v548, 2
      %v550 = vadd.f32 %v548, %v549
      %v551 = vrot.slane %v550, 1
      %v552 = vadd.f32 %v550, %v551
      %v553 = vrcp.pop 8.0
      %v554 = vmul.f32 %v552, %v553
      %v555 = vsub.f32 %v544, %v554
      %v556 = vmul.f32 %v555, %v555
      %v557 = vrot.slane %v556, 4
      %v558 = vadd.f32 %v556, %v557
      %v559 = vrot.slane %v558, 2
      %v560 = vadd.f32 %v558, %v559
      %v561 = vrot.slane %v560, 1
      %v562 = vadd.f32 %v560, %v561
      %v563 = vmul.f32 %v562, %v553
      %v564 = vadd.f32 %v563, 1e-05
      %v565 = vrsqrt.pop %v564
      %v566 = vmul.f32 %v555, %v565
      %vm567 = vcmp.gt.f32.partialorder %v566, 20.0
      %v568 = vmin.f32 %v566, 20.0
      %v569 = vmul.f32 %v568, 1.442695
      %v570 = vpow.pop %v569
      %v571 = vadd.f32 %v570, 1.0
      %v572 = vlog2.pop %v571
      %v573 = vmul.f32 %v572, 0.6931472
      %v574 = vmul.f32 -0.5, %v570
      %v575 = vadd.f32 %v574, 1.0
      %v576 = vmul.f32 %v575, %v570
      %v577 = vand.u32 2147483647, %v570
      %vm578 = vcmp.lt.f32.partialorder %v577, 0.0004427343
      %v579 = vsel %vm578, %v576, %v573
      %v580 = vsel %vm567, %v566, %v579
      %581 = vst [vmem:[#allocation11] sm:$0xff] %v580
    $region45: #{tpu_custom_call.1} parent=1 // pred_fallthru
      _
    // Predicated region
    $region46: #{tpu_custom_call.1} parent=1 // pred_check
      _
    $region47: #{tpu_custom_call.1} parent=1 // pred_check_branch
      %583 = sbr.rel (0) target = $region49
    $region48: #{tpu_custom_call.1} parent=1 // pred_region
      %s585 = ssub.s32 128, 128
      %586 = vsyncadd [#allocation5], %s585
      %s588 = sshll.u32 [#allocation11], 4
      %s589 = int_to_ptr.vmem [resolvable:$true] %s588
      %591 = dma.vmem_to_hbm [thread:$0]  %s589, 128, %s5, [#allocation5]
    $region49: #{tpu_custom_call.1} parent=1 // pred_fallthru
      _
    // Predicated region
    $region50: #{tpu_custom_call.1} parent=1 // pred_check
      _
    $region51: #{tpu_custom_call.1} parent=1 // pred_check_branch
      %593 = sbr.rel (0) target = $region53
    $region52: #{tpu_custom_call.1} parent=1 // pred_region
      %594 = dma.done [#allocation5], 128
    $region53: #{tpu_custom_call.1} parent=1 // pred_fallthru
      _
    %595 = vsyncpa [#allocation4], 1
    %596 = vsyncpa [#allocation7], 1
    %597 = vsyncpa [#allocation10], 1
    %598 = vsyncpa [#allocation5], 1

</llo_original>
